<compile_context>
chip_gen: v7x
topology: tpu7x:2x2x1
jax: 0.10.0
libtpu: 0.0.40
codegen_flags: <defaults>
</compile_context>

<pallas_src>
import functools

import jax
import jax.numpy as jnp
from jax.experimental import pallas as pl
from jax.experimental.pallas import tpu as pltpu


_LANES = 128
_SUBLANES = 8
_GRANULE = _LANES * _SUBLANES            # 1024 elems = one (8,128) f32 tile
_SLAB_WIDTH = 512                        # lane-dense last dim (multiple of 128)
# ~2 MiB per block -> 4 double-buffered in/out buffers = 8 MiB VMEM: safe on
# v5e (16 MiB scoped), v6e (32/128 MiB) and v7x (32/64 MiB) without flags.
_TARGET_BLOCK_BYTES = 2 * 1024 * 1024


def _swish_kernel(x_ref, o_ref, *, b, compute_dtype):
    x = x_ref[...].astype(compute_dtype)
    z = jnp.exp((-b) * x)                # EUP
    denom = 1.0 + z                      # VPU
    if jnp.dtype(compute_dtype) == jnp.dtype(jnp.float32):
        # approx reciprocal -> EUP vrcp slot (otherwise idle next to the exp).
        y = x * pl.reciprocal(denom, approx=True)
    else:
        y = x / denom
    o_ref[...] = y.astype(o_ref.dtype)


def swish(x, b: float = 1.0, *, donate_input: bool = False):
    """Swish/SiLU with slope b, matching torch: x / (1 + exp(-b*x))."""
    orig_shape = x.shape
    orig_dtype = x.dtype
    n = x.size

    # bf16 stays bf16 (native on v6e/v7x VPU/EUP: half the bytes & vregs);
    # everything else computes in f32.
    compute_dtype = jnp.bfloat16 if orig_dtype == jnp.bfloat16 else jnp.float32

    flat = jnp.ravel(x)

    if n % _GRANULE == 0:
        # Common case: no physical pad, no trailing slice -> HBM traffic is
        # exactly the kernel's 1 read + 1 write.
        total = n
        padded = flat
    else:
        # Ragged fallback: one pad pass (and one slice at the end).
        total = -(-n // _GRANULE) * _GRANULE
        padded = jnp.pad(flat, (0, total - n))

    width = _SLAB_WIDTH if total % _SLAB_WIDTH == 0 else _LANES
    rows = total // width
    x2d = padded.reshape(rows, width)

    itemsize = jnp.dtype(orig_dtype).itemsize
    target_rows = max(
        _SUBLANES,
        (_TARGET_BLOCK_BYTES // (width * itemsize)) // _SUBLANES * _SUBLANES)
    tr = rows if rows <= target_rows else target_rows
    # Non-divisible row counts are handled by a masked edge block, never by
    # shrinking the tile.
    grid = (pl.cdiv(rows, tr),)

    kernel = functools.partial(_swish_kernel, b=float(b),
                               compute_dtype=compute_dtype)

    out2d = pl.pallas_call(
        kernel,
        out_shape=jax.ShapeDtypeStruct((rows, width), orig_dtype),
        grid_spec=pltpu.PrefetchScalarGridSpec(
            num_scalar_prefetch=0,
            grid=grid,
            in_specs=[pl.BlockSpec((tr, width), lambda i: (i, 0))],
            out_specs=pl.BlockSpec((tr, width), lambda i: (i, 0)),
        ),
        compiler_params=pltpu.CompilerParams(
            dimension_semantics=("parallel",)),
        # Optionally reuse the input HBM buffer for the output (caller must
        # not need x afterwards).
        input_output_aliases=({0: 0} if donate_input else {}),
    )(x2d)

    if total == n:
        return out2d.reshape(orig_shape)
    return out2d.reshape(-1)[:n].reshape(orig_shape)


if __name__ == "__main__":
    key = jax.random.PRNGKey(0)
    # NCHW input like a conv activation: batch=2, channels=4, spatial=16x16
    x = jax.random.normal(key, (2, 4, 16, 16), dtype=jnp.float32)

    b = 1.0
    y = jax.block_until_ready(swish(x, b))

    # Reference (pure JAX, same formula as the torch module).
    y_ref = x / (1.0 + jnp.exp(-b * x))
    assert y.shape == x.shape and y.dtype == x.dtype
    # Tolerance loosened vs 1e-5: the approx (EUP) reciprocal trades a little
    # accuracy for freed VALU slots, per the perf review.
    assert jnp.allclose(y, y_ref, rtol=2e-2, atol=2e-3), float(
        jnp.max(jnp.abs(y - y_ref)))

    print("KERNEL_OK")
</pallas_src>

<mosaic_0001>
module attributes {stable_mosaic.version = 11 : i64} {
  func.func @_swish_kernel(%arg0: i32, %arg1: memref<4x512xf32, #tpu.memory_space<vmem>>, %arg2: memref<4x512xf32, #tpu.memory_space<vmem>>) attributes {dimension_semantics = [#tpu.dimension_semantics<parallel>], iteration_bounds = array<i64: 1>, scalar_prefetch = 0 : i64, scratch_operands = 0 : i64, tpu.core_type = #tpu.core_type<tc>, window_params = [{transform_indices = @transform_0, window_bounds = array<i64: 4, 512>}, {transform_indices = @transform_1, window_bounds = array<i64: 4, 512>}]} {
    %c0 = arith.constant 0 : index
    %c0_0 = arith.constant 0 : index
    %0 = vector.load %arg1[%c0, %c0_0] : memref<4x512xf32, #tpu.memory_space<vmem>>, vector<4x512xf32>
    %cst = arith.constant -1.000000e+00 : f32
    %1 = vector.broadcast %cst : f32 to vector<4x512xf32>
    %2 = arith.mulf %1, %0 : vector<4x512xf32>
    %3 = math.exp %2 : vector<4x512xf32>
    %cst_1 = arith.constant 1.000000e+00 : f32
    %4 = vector.broadcast %cst_1 : f32 to vector<4x512xf32>
    %5 = arith.addf %4, %3 : vector<4x512xf32>
    %6 = tpu.reciprocal %5 {approx = true} : vector<4x512xf32> -> vector<4x512xf32>
    %7 = arith.mulf %0, %6 : vector<4x512xf32>
    %c0_2 = arith.constant 0 : index
    %c0_3 = arith.constant 0 : index
    %8 = vector.load %arg2[%c0_2, %c0_3] : memref<4x512xf32, #tpu.memory_space<vmem>>, vector<4x512xf32>
    tpu.vector_store %arg2[%c0_2, %c0_3], %7 {strides = array<i32>} : memref<4x512xf32, #tpu.memory_space<vmem>>, vector<4x512xf32>,
    return
  }
  func.func @transform_0(%arg0: i32) -> (i32, i32) {
    %c0_i32 = arith.constant 0 : i32
    %c0_i32_0 = arith.constant 0 : i32
    return %arg0, %c0_i32 : i32, i32
  }
  func.func @transform_1(%arg0: i32) -> (i32, i32) {
    %c0_i32 = arith.constant 0 : i32
    %c0_i32_0 = arith.constant 0 : i32
    return %arg0, %c0_i32 : i32, i32
  }
}

</mosaic_0001>

<llo_original>
// kernel: tpu_custom_call.1
$region0: #{tpu_custom_call.1}
  #allocation0 [shape = 'u32[]', space=smem, size = 0x4, offset = 0x4, fixed_abs, tag = 'smem constant byte address 0x4 - core index']
  #allocation1 [shape = 'u32[144,128]{1,0:T(1,128)}', space=vmem, size = 0x12000, scoped, tag = 'internal scratch']
  %s0 = inlined_call_operand.hbm [shape: f32[4,512], index: 0, kind: input, shape index: {}]
  %s1 = inlined_call_operand.hbm [shape: f32[4,512], index: 1, kind: output, shape index: {}]
  %s2 = sld [smem:[#allocation0]]
  $region18: #{tpu_custom_call.1} parent=0
    _
  %s4 = ssub.s32 1, %s2
  %s5 = scalar_select 0, %s4, %s2
  $region1: #{tpu_custom_call.1} parent=0
    #allocation2 [shape = 'u8[8192]{0}', space=vmem, size = 0x2000, scoped, tag = 'input window, operand 0, single buffered']
    #allocation3 [shape = 's32[1]{0}', space=sflag, size = 0x4, scoped, tag = 'scoped memory for tpu_custom_call.1']
    #allocation4 [shape = 's32[1]{0}', space=sflag, size = 0x4, scoped, tag = 'scoped memory for tpu_custom_call.1']
    #allocation5 [shape = 'u8[8192]{0}', space=vmem, size = 0x2000, scoped, tag = 'output window, operand 0, single buffered']
    %6 = vsyncpa [#allocation3], 0
    %7 = vsyncpa [#allocation4], 0
    // Predicated region
    $region2: #{tpu_custom_call.1} parent=1 // pred_check
      _
    $region3: #{tpu_custom_call.1} parent=1 // pred_check_branch
      %9 = sbr.rel (0) target = $region5
    $region4: #{tpu_custom_call.1} parent=1 // pred_region
      %s11 = ssub.s32 256, 256
      %12 = vsyncadd [#allocation3], %s11
      %s14 = sshll.u32 [#allocation2], 4
      %s15 = int_to_ptr.vmem [resolvable:$true] %s14
      %17 = dma.hbm_to_vmem [thread:$0]  %s0, 256, %s15, [#allocation3]
    $region5: #{tpu_custom_call.1} parent=1 // pred_fallthru
      _
    // Predicated region
    $region6: #{tpu_custom_call.1} parent=1 // pred_check
      _
    $region7: #{tpu_custom_call.1} parent=1 // pred_check_branch
      %19 = sbr.rel (0) target = $region9
    $region8: #{tpu_custom_call.1} parent=1 // pred_region
      %20 = dma.done [#allocation3], 256
    $region9: #{tpu_custom_call.1} parent=1 // pred_fallthru
      _
    %v21 = vld [vmem:[#allocation2] sm:$0xff]
    %v22 = vld [vmem:[#allocation2 + $0x8] sm:$0xff]
    %v23 = vmul.f32 %v21, -1.0
    %v24 = vmul.f32 %v22, -1.0
    %v25 = vmul.f32 %v23, 1.442695
    %v26 = vpow.pop %v25
    %v27 = vmul.f32 %v24, 1.442695
    %v28 = vpow.pop %v27
    %v29 = vadd.f32 %v26, 1.0
    %v30 = vadd.f32 %v28, 1.0
    %v31 = vrcp.pop %v29
    %v32 = vrcp.pop %v30
    %v33 = vmul.f32 %v21, %v31
    %v34 = vmul.f32 %v22, %v32
    %35 = vst [vmem:[#allocation5] sm:$0xff] %v33
    %36 = vst [vmem:[#allocation5 + $0x8] sm:$0xff] %v34
    // Predicated region
    $region10: #{tpu_custom_call.1} parent=1 // pred_check
      _
    $region11: #{tpu_custom_call.1} parent=1 // pred_check_branch
      %38 = sbr.rel (0) target = $region13
    $region12: #{tpu_custom_call.1} parent=1 // pred_region
      %s40 = ssub.s32 256, 256
      %41 = vsyncadd [#allocation4], %s40
      %s43 = sshll.u32 [#allocation5], 4
      %s44 = int_to_ptr.vmem [resolvable:$true] %s43
      %46 = dma.vmem_to_hbm [thread:$0]  %s44, 256, %s1, [#allocation4]
    $region13: #{tpu_custom_call.1} parent=1 // pred_fallthru
      _
    // Predicated region
    $region14: #{tpu_custom_call.1} parent=1 // pred_check
      _
    $region15: #{tpu_custom_call.1} parent=1 // pred_check_branch
      %48 = sbr.rel (0) target = $region17
    $region16: #{tpu_custom_call.1} parent=1 // pred_region
      %49 = dma.done [#allocation4], 256
    $region17: #{tpu_custom_call.1} parent=1 // pred_fallthru
      _
    %50 = vsyncpa [#allocation3], 1
    %51 = vsyncpa [#allocation4], 1

</llo_original>
